<compile_context>
chip_gen: v7x
topology: tpu7x:2x2x1
jax: 0.10.0
libtpu: 0.0.40
codegen_flags: <defaults>
</compile_context>

<pallas_src>
import jax
import jax.numpy as jnp
from jax.experimental import pallas as pl
from jax.experimental.pallas import tpu as pltpu


def _round_up(x: int, m: int) -> int:
    return ((x + m - 1) // m) * m


def _sublane(itemsize: int) -> int:
    # rows per vreg for a given element size (f32: 8, bf16: 16, int8/fp8: 32)
    return max(8, 8 * (4 // max(itemsize, 1)))


def _chip_params():
    """(per-activation-buffer byte target, usable VMEM capacity) for this TPU."""
    kind = ""
    try:
        kind = jax.devices()[0].device_kind.lower()
    except Exception:
        pass
    if "v7" in kind or "7x" in kind:
        per_buf = 4 << 20          # ~3.2 TB/s HBM: >= 8 MiB combined in+out per step
    elif "v6" in kind:
        per_buf = 2 << 20
    elif "v5" in kind:
        per_buf = 1 << 20
    else:
        per_buf = 2 << 20
    try:
        vmem_cap = int(pltpu.get_tpu_info().vmem_capacity_bytes)
    except Exception:
        vmem_cap = (64 << 20) if ("v7" in kind or "7x" in kind) else (128 << 20)
    return per_buf, vmem_cap


def _make_res_block_kernel(c: int, bn: int, small_c: bool, io_dtype):
    io_is_f32 = jnp.dtype(io_dtype) == jnp.float32
    use_bf16_mxu = (not small_c) and jnp.dtype(io_dtype) == jnp.bfloat16 and c >= 1024

    def kernel(x_ref, w_ref, o_ref):
        w = w_ref[...]                                    # (C, C)
        if small_c:
            # C broadcast FMAs on the VPU: a CxC sliver of the MXU would be waste.
            x = x_ref[...]                                # (bn, C, T)
            xf = x.astype(jnp.float32)
            wf = w.astype(jnp.float32)
            y = wf[:, 0:1][None, :, :] * xf[:, 0:1, :]
            for k in range(1, c):
                y = y + wf[:, k:k + 1][None, :, :] * xf[:, k:k + 1, :]
            y = jnp.maximum(y, 0.0)
            res = xf + y if io_is_f32 else x + y.astype(x.dtype)
            o_ref[...] = res.astype(o_ref.dtype)
        else:
            # Channel-mixing matmul on the MXU; lane-dense HW tile as the N dim.
            wk = w.astype(jnp.bfloat16) if use_bf16_mxu else w
            for b in range(bn):                           # bn <= 8 on this path
                xb = x_ref[b]                             # (C, T)
                y = jnp.dot(wk, xb, preferred_element_type=jnp.float32)
                y = jnp.maximum(y, 0.0)
                res = xb.astype(jnp.float32) + y if io_is_f32 else xb + y.astype(xb.dtype)
                o_ref[b] = res.astype(o_ref.dtype)

    return kernel


def res_block(x_nchw, w_oihw):
    """Forward of RES_Block: x + relu(conv1x1(x)), no bias. NCHW in/out.

    x_nchw: (N, C, H, W);  w_oihw: (C_out, C_in, 1, 1) with C_out == C_in.
    """
    N, C, H, W = x_nchw.shape
    assert w_oihw.shape == (C, C, 1, 1), "residual add requires in_dim == out_dim"

    HW = H * W
    x3 = x_nchw.reshape(N, C, HW)                         # H*W is the lane axis
    w_mat = w_oihw[:, :, 0, 0]                            # (C_out, C_in): y = W @ x

    itemsize = jnp.dtype(x3.dtype).itemsize
    c_pad = _round_up(C, _sublane(itemsize))              # sublane-padded C in VMEM
    col_bytes = c_pad * itemsize                          # VMEM bytes per lane column

    per_buf_target, vmem_cap = _chip_params()
    small_c = C <= 16

    # --- lane (H*W) tile + batch folding, sized purely by bytes -----------------
    max_lanes = max(128, (per_buf_target // col_bytes) // 128 * 128)
    if max_lanes >= HW:
        tile_hw = HW                                      # whole spatial extent per block
        slab_bytes = col_bytes * _round_up(tile_hw, 128)
        bn_cap = 256 if small_c else 8                    # MXU path unrolls over bn
        bn = int(max(1, min(N, bn_cap, per_buf_target // max(slab_bytes, 1))))
    else:
        tile_hw = max_lanes                               # multiple of 128; last block ragged
        bn = 1

    grid = (pl.cdiv(N, bn), pl.cdiv(HW, tile_hw))

    # --- VMEM budget from actual block sizes (incl. padding) + margin -----------
    lane_pad = _round_up(tile_hw, 128)
    act_block_bytes = bn * c_pad * lane_pad * itemsize
    w_itemsize = jnp.dtype(w_mat.dtype).itemsize
    w_block_bytes = _round_up(C, _sublane(w_itemsize)) * _round_up(C, 128) * w_itemsize
    single_buffer_w = w_block_bytes > (1 << 20)           # only matters for large C
    f32_tmp_bytes = 2 * bn * _round_up(C, 8) * lane_pad * 4
    needed = (4 * act_block_bytes                         # double-buffered in + out blocks
              + (1 if single_buffer_w else 2) * w_block_bytes
              + f32_tmp_bytes)
    budget_cap = max(8 << 20, vmem_cap - (12 << 20))      # headroom for Mosaic scratch
    vmem_limit = int(min(budget_cap, max(needed + needed // 2 + (1 << 20), 4 << 20)))

    kernel = _make_res_block_kernel(C, bn, small_c, x3.dtype)

    act_spec = pl.BlockSpec((bn, C, tile_hw), lambda nb, j: (nb, 0, j))
    if single_buffer_w:
        # Constant index_map -> fetched once; single-buffer so a big weight does
        # not eat the VMEM the activation tiles need (matters at C >= ~1024).
        w_spec = pl.BlockSpec((C, C), lambda nb, j: (0, 0), pipeline_mode=pl.Buffered(1))
    else:
        w_spec = pl.BlockSpec((C, C), lambda nb, j: (0, 0))

    out3 = pl.pallas_call(
        kernel,
        out_shape=jax.ShapeDtypeStruct((N, C, HW), x3.dtype),
        grid_spec=pltpu.PrefetchScalarGridSpec(
            num_scalar_prefetch=0,
            grid=grid,
            in_specs=[act_spec, w_spec],
            out_specs=pl.BlockSpec((bn, C, tile_hw), lambda nb, j: (nb, 0, j)),
        ),
        input_output_aliases={0: 0},                      # in-place when x is donated
        compiler_params=pltpu.CompilerParams(
            dimension_semantics=("parallel", "parallel"),
            vmem_limit_bytes=vmem_limit,
        ),
        cost_estimate=pl.CostEstimate(
            flops=2 * N * C * C * HW,
            transcendentals=0,
            bytes_accessed=2 * N * C * HW * itemsize + C * C * w_itemsize,
        ),
    )(x3, w_mat)

    return out3.reshape(N, C, H, W)


def res_block_reference(x_nchw, w_oihw):
    """Pure-JAX reference of the PyTorch forward (f32)."""
    w_mat = w_oihw[:, :, 0, 0]                            # (C_out, C_in)
    y = jnp.einsum("oi,nihw->nohw", w_mat, x_nchw)        # 1x1 conv, no bias
    return x_nchw + jnp.maximum(y, 0.0)


if __name__ == "__main__":
    key = jax.random.PRNGKey(0)
    k_x, k_w = jax.random.split(key)

    N, C, H, W = 2, 4, 16, 16  # in_dim == out_dim == 4
    x = jax.random.normal(k_x, (N, C, H, W), dtype=jnp.float32)
    # deterministic synthetic conv weight, matches nn.Conv2d(C, C, 1, 1, bias=False)
    w = jax.random.normal(k_w, (C, C, 1, 1), dtype=jnp.float32) * 0.1

    ref = res_block_reference(x, w)          # compute before donating x

    run = jax.jit(res_block, donate_argnums=(0,))
    out = run(x, w)
    jax.block_until_ready(out)

    assert out.shape == (N, C, H, W)
    assert jnp.allclose(out, ref, atol=1e-5, rtol=1e-5), "mismatch vs reference"

    print("KERNEL_OK")
</pallas_src>

<mosaic_0001>
module attributes {stable_mosaic.version = 11 : i64} {
  func.func @kernel(%arg0: i32, %arg1: i32, %arg2: memref<2x4x256xf32, #tpu.memory_space<vmem>>, %arg3: memref<4x4xf32, #tpu.memory_space<vmem>>, %arg4: memref<2x4x256xf32, #tpu.memory_space<vmem>>) attributes {dimension_semantics = [#tpu.dimension_semantics<parallel>, #tpu.dimension_semantics<parallel>], iteration_bounds = array<i64: 1, 1>, scalar_prefetch = 0 : i64, scratch_operands = 0 : i64, tpu.core_type = #tpu.core_type<tc>, window_params = [{transform_indices = @transform_0, window_bounds = array<i64: 2, 4, 256>}, {pipeline_mode = #tpu.pipeline_mode<synchronous>, transform_indices = @transform_1, window_bounds = array<i64: 4, 4>}, {transform_indices = @transform_2, window_bounds = array<i64: 2, 4, 256>}]} {
    %c0 = arith.constant 0 : index
    %c0_0 = arith.constant 0 : index
    %0 = vector.load %arg3[%c0, %c0_0] : memref<4x4xf32, #tpu.memory_space<vmem>>, vector<4x4xf32>
    %c0_1 = arith.constant 0 : index
    %c0_2 = arith.constant 0 : index
    %c0_3 = arith.constant 0 : index
    %1 = vector.load %arg2[%c0_1, %c0_2, %c0_3] : memref<2x4x256xf32, #tpu.memory_space<vmem>>, vector<2x4x256xf32>
    %2 = vector.extract_strided_slice %0 {offsets = [0, 0], sizes = [4, 1], strides = [1, 1]} : vector<4x4xf32> to vector<4x1xf32>
    %3 = vector.shape_cast %2 : vector<4x1xf32> to vector<1x4x1xf32>
    %4 = vector.extract_strided_slice %1 {offsets = [0, 0, 0], sizes = [2, 1, 256], strides = [1, 1, 1]} : vector<2x4x256xf32> to vector<2x1x256xf32>
    %5 = vector.broadcast %3 : vector<1x4x1xf32> to vector<2x4x256xf32>
    %6 = vector.broadcast %4 : vector<2x1x256xf32> to vector<2x4x256xf32>
    %7 = arith.mulf %5, %6 : vector<2x4x256xf32>
    %8 = vector.extract_strided_slice %0 {offsets = [0, 1], sizes = [4, 1], strides = [1, 1]} : vector<4x4xf32> to vector<4x1xf32>
    %9 = vector.shape_cast %8 : vector<4x1xf32> to vector<1x4x1xf32>
    %10 = vector.extract_strided_slice %1 {offsets = [0, 1, 0], sizes = [2, 1, 256], strides = [1, 1, 1]} : vector<2x4x256xf32> to vector<2x1x256xf32>
    %11 = vector.broadcast %9 : vector<1x4x1xf32> to vector<2x4x256xf32>
    %12 = vector.broadcast %10 : vector<2x1x256xf32> to vector<2x4x256xf32>
    %13 = arith.mulf %11, %12 : vector<2x4x256xf32>
    %14 = arith.addf %7, %13 : vector<2x4x256xf32>
    %15 = vector.extract_strided_slice %0 {offsets = [0, 2], sizes = [4, 1], strides = [1, 1]} : vector<4x4xf32> to vector<4x1xf32>
    %16 = vector.shape_cast %15 : vector<4x1xf32> to vector<1x4x1xf32>
    %17 = vector.extract_strided_slice %1 {offsets = [0, 2, 0], sizes = [2, 1, 256], strides = [1, 1, 1]} : vector<2x4x256xf32> to vector<2x1x256xf32>
    %18 = vector.broadcast %16 : vector<1x4x1xf32> to vector<2x4x256xf32>
    %19 = vector.broadcast %17 : vector<2x1x256xf32> to vector<2x4x256xf32>
    %20 = arith.mulf %18, %19 : vector<2x4x256xf32>
    %21 = arith.addf %14, %20 : vector<2x4x256xf32>
    %22 = vector.extract_strided_slice %0 {offsets = [0, 3], sizes = [4, 1], strides = [1, 1]} : vector<4x4xf32> to vector<4x1xf32>
    %23 = vector.shape_cast %22 : vector<4x1xf32> to vector<1x4x1xf32>
    %24 = vector.extract_strided_slice %1 {offsets = [0, 3, 0], sizes = [2, 1, 256], strides = [1, 1, 1]} : vector<2x4x256xf32> to vector<2x1x256xf32>
    %25 = vector.broadcast %23 : vector<1x4x1xf32> to vector<2x4x256xf32>
    %26 = vector.broadcast %24 : vector<2x1x256xf32> to vector<2x4x256xf32>
    %27 = arith.mulf %25, %26 : vector<2x4x256xf32>
    %28 = arith.addf %21, %27 : vector<2x4x256xf32>
    %cst = arith.constant 0.000000e+00 : f32
    %29 = vector.broadcast %cst : f32 to vector<2x4x256xf32>
    %30 = arith.maximumf %28, %29 : vector<2x4x256xf32>
    %31 = arith.addf %1, %30 : vector<2x4x256xf32>
    %c0_4 = arith.constant 0 : index
    %c0_5 = arith.constant 0 : index
    %c0_6 = arith.constant 0 : index
    %32 = vector.load %arg4[%c0_4, %c0_5, %c0_6] : memref<2x4x256xf32, #tpu.memory_space<vmem>>, vector<2x4x256xf32>
    tpu.vector_store %arg4[%c0_4, %c0_5, %c0_6], %31 {strides = array<i32>} : memref<2x4x256xf32, #tpu.memory_space<vmem>>, vector<2x4x256xf32>,
    return
  }
  func.func @transform_0(%arg0: i32, %arg1: i32) -> (i32, i32, i32) {
    %c0_i32 = arith.constant 0 : i32
    %c0_i32_0 = arith.constant 0 : i32
    return %arg0, %c0_i32, %arg1 : i32, i32, i32
  }
  func.func @transform_1(%arg0: i32, %arg1: i32) -> (i32, i32) {
    %c0_i32 = arith.constant 0 : i32
    %c0_i32_0 = arith.constant 0 : i32
    %c0_i32_1 = arith.constant 0 : i32
    return %c0_i32, %c0_i32_0 : i32, i32
  }
  func.func @transform_2(%arg0: i32, %arg1: i32) -> (i32, i32, i32) {
    %c0_i32 = arith.constant 0 : i32
    %c0_i32_0 = arith.constant 0 : i32
    return %arg0, %c0_i32, %arg1 : i32, i32, i32
  }
}

</mosaic_0001>

<llo_original>
// kernel: res_block.1
$region0: #{res_block.1}
  #allocation0 [shape = 'u32[]', space=smem, size = 0x4, offset = 0x4, fixed_abs, tag = 'smem constant byte address 0x4 - core index']
  #allocation1 [shape = 'u32[144,128]{1,0:T(1,128)}', space=vmem, size = 0x12000, scoped, tag = 'internal scratch']
  %s0 = inlined_call_operand.vmem [shape: f32[2,4,256], index: 0, kind: input, shape index: {}, may-alias: {0,2}]
  %s1 = inlined_call_operand.vmem [shape: f32[4,4], index: 1, kind: input, shape index: {}]
  %s2 = inlined_call_operand.vmem [shape: f32[2,4,256], index: 2, kind: output, shape index: {}, may-alias: {0,2}]
  %s3 = sld [smem:[#allocation0]]
  $region18: #{res_block.1} parent=0
    _
  %s5 = ssub.s32 1, %s3
  %s6 = scalar_select 0, %s5, %s3
  // Predicated region
  $region2: #{res_block.1} parent=0 // pred_check
    _
  $region3: #{res_block.1} parent=0 // pred_check_branch
    %8 = sbr.rel (0) target = $region5
  $region4: #{res_block.1} parent=0 // pred_region
    _
  $region5: #{res_block.1} parent=0 // pred_fallthru
    _
  // Predicated region
  $region6: #{res_block.1} parent=0 // pred_check
    _
  $region7: #{res_block.1} parent=0 // pred_check_branch
    %10 = sbr.rel (0) target = $region9
  $region8: #{res_block.1} parent=0 // pred_region
    _
  $region9: #{res_block.1} parent=0 // pred_fallthru
    _
  %v11 = vld [vmem:[%s1] sm:$0xf]
  %v12 = vld [vmem:[%s0] sm:$0xff]
  %v13 = vld [vmem:[%s0 + $0x8] sm:$0xff]
  %15 = vset.pattern.permute.xlu0 0
  %16 = vperm.xlu0 %15, %v11
  %v17 = vpop.permute.xlu0 %16
  %v21 = vlaneseq
  %v22 = vshrl.u32 %v21, 7
  %v23 = vsub.s32 0, %v22
  %v24 = vrot.slane %v12, %v23
  %v25 = vlaneseq
  %v26 = vshrl.u32 %v25, 7
  %v27 = vsub.s32 4, %v26
  %v28 = vrot.slane %v12, %v27
  %v29 = vlaneseq
  %v30 = vshrl.u32 %v29, 7
  %v31 = vsub.s32 0, %v30
  %v32 = vrot.slane %v13, %v31
  %v33 = vlaneseq
  %v34 = vshrl.u32 %v33, 7
  %v35 = vsub.s32 4, %v34
  %v36 = vrot.slane %v13, %v35
  %v41 = vlaneseq
  %v42 = vshrl.u32 %v41, 7
  %v43 = vsub.s32 0, %v42
  %v44 = vrot.slane %v24, %v43
  %v45 = vlaneseq
  %v46 = vshrl.u32 %v45, 7
  %v47 = vsub.s32 0, %v46
  %v48 = vrot.slane %v28, %v47
  %v49 = vlaneseq
  %v50 = vshrl.u32 %v49, 7
  %v51 = vsub.s32 0, %v50
  %v52 = vrot.slane %v32, %v51
  %v53 = vlaneseq
  %v54 = vshrl.u32 %v53, 7
  %v55 = vsub.s32 0, %v54
  %v56 = vrot.slane %v36, %v55
  %v57 = vmul.f32 %v17, %v44
  %v58 = vmul.f32 %v17, %v48
  %v59 = vmul.f32 %v17, %v52
  %v60 = vmul.f32 %v17, %v56
  %61 = vset.pattern.permute.xlu0 1
  %62 = vperm.xlu0 %61, %v11
  %v63 = vpop.permute.xlu0 %62
  %v65 = vlaneseq
  %v66 = vshrl.u32 %v65, 7
  %v67 = vsub.s32 1, %v66
  %v68 = vrot.slane %v12, %v67
  %v69 = vlaneseq
  %v70 = vshrl.u32 %v69, 7
  %v71 = vsub.s32 5, %v70
  %v72 = vrot.slane %v12, %v71
  %v73 = vlaneseq
  %v74 = vshrl.u32 %v73, 7
  %v75 = vsub.s32 1, %v74
  %v76 = vrot.slane %v13, %v75
  %v77 = vlaneseq
  %v78 = vshrl.u32 %v77, 7
  %v79 = vsub.s32 5, %v78
  %v80 = vrot.slane %v13, %v79
  %v85 = vlaneseq
  %v86 = vshrl.u32 %v85, 7
  %v87 = vsub.s32 1, %v86
  %v88 = vrot.slane %v68, %v87
  %v89 = vlaneseq
  %v90 = vshrl.u32 %v89, 7
  %v91 = vsub.s32 1, %v90
  %v92 = vrot.slane %v72, %v91
  %v93 = vlaneseq
  %v94 = vshrl.u32 %v93, 7
  %v95 = vsub.s32 1, %v94
  %v96 = vrot.slane %v76, %v95
  %v97 = vlaneseq
  %v98 = vshrl.u32 %v97, 7
  %v99 = vsub.s32 1, %v98
  %v100 = vrot.slane %v80, %v99
  %v101 = vmul.f32 %v63, %v88
  %v102 = vmul.f32 %v63, %v92
  %v103 = vmul.f32 %v63, %v96
  %v104 = vmul.f32 %v63, %v100
  %v105 = vadd.f32 %v57, %v101
  %v106 = vadd.f32 %v58, %v102
  %v107 = vadd.f32 %v59, %v103
  %v108 = vadd.f32 %v60, %v104
  %109 = vset.pattern.permute.xlu0 2
  %110 = vperm.xlu0 %109, %v11
  %v111 = vpop.permute.xlu0 %110
  %v113 = vlaneseq
  %v114 = vshrl.u32 %v113, 7
  %v115 = vsub.s32 2, %v114
  %v116 = vrot.slane %v12, %v115
  %v117 = vlaneseq
  %v118 = vshrl.u32 %v117, 7
  %v119 = vsub.s32 6, %v118
  %v120 = vrot.slane %v12, %v119
  %v121 = vlaneseq
  %v122 = vshrl.u32 %v121, 7
  %v123 = vsub.s32 2, %v122
  %v124 = vrot.slane %v13, %v123
  %v125 = vlaneseq
  %v126 = vshrl.u32 %v125, 7
  %v127 = vsub.s32 6, %v126
  %v128 = vrot.slane %v13, %v127
  %v133 = vlaneseq
  %v134 = vshrl.u32 %v133, 7
  %v135 = vsub.s32 2, %v134
  %v136 = vrot.slane %v116, %v135
  %v137 = vlaneseq
  %v138 = vshrl.u32 %v137, 7
  %v139 = vsub.s32 2, %v138
  %v140 = vrot.slane %v120, %v139
  %v141 = vlaneseq
  %v142 = vshrl.u32 %v141, 7
  %v143 = vsub.s32 2, %v142
  %v144 = vrot.slane %v124, %v143
  %v145 = vlaneseq
  %v146 = vshrl.u32 %v145, 7
  %v147 = vsub.s32 2, %v146
  %v148 = vrot.slane %v128, %v147
  %v149 = vmul.f32 %v111, %v136
  %v150 = vmul.f32 %v111, %v140
  %v151 = vmul.f32 %v111, %v144
  %v152 = vmul.f32 %v111, %v148
  %v153 = vadd.f32 %v105, %v149
  %v154 = vadd.f32 %v106, %v150
  %v155 = vadd.f32 %v107, %v151
  %v156 = vadd.f32 %v108, %v152
  %157 = vset.pattern.permute.xlu0 3
  %158 = vperm.xlu0 %157, %v11
  %v159 = vpop.permute.xlu0 %158
  %v161 = vlaneseq
  %v162 = vshrl.u32 %v161, 7
  %v163 = vsub.s32 3, %v162
  %v164 = vrot.slane %v12, %v163
  %v165 = vlaneseq
  %v166 = vshrl.u32 %v165, 7
  %v167 = vsub.s32 7, %v166
  %v168 = vrot.slane %v12, %v167
  %v169 = vlaneseq
  %v170 = vshrl.u32 %v169, 7
  %v171 = vsub.s32 3, %v170
  %v172 = vrot.slane %v13, %v171
  %v173 = vlaneseq
  %v174 = vshrl.u32 %v173, 7
  %v175 = vsub.s32 7, %v174
  %v176 = vrot.slane %v13, %v175
  %v181 = vlaneseq
  %v182 = vshrl.u32 %v181, 7
  %v183 = vsub.s32 3, %v182
  %v184 = vrot.slane %v164, %v183
  %v185 = vlaneseq
  %v186 = vshrl.u32 %v185, 7
  %v187 = vsub.s32 3, %v186
  %v188 = vrot.slane %v168, %v187
  %v189 = vlaneseq
  %v190 = vshrl.u32 %v189, 7
  %v191 = vsub.s32 3, %v190
  %v192 = vrot.slane %v172, %v191
  %v193 = vlaneseq
  %v194 = vshrl.u32 %v193, 7
  %v195 = vsub.s32 3, %v194
  %v196 = vrot.slane %v176, %v195
  %v197 = vmul.f32 %v159, %v184
  %v198 = vmul.f32 %v159, %v188
  %v199 = vmul.f32 %v159, %v192
  %v200 = vmul.f32 %v159, %v196
  %v201 = vadd.f32 %v153, %v197
  %v202 = vadd.f32 %v154, %v198
  %v203 = vadd.f32 %v155, %v199
  %v204 = vadd.f32 %v156, %v200
  %v205 = vmax.f32 %v201, 0.0
  %v206 = vmax.f32 %v202, 0.0
  %v207 = vmax.f32 %v203, 0.0
  %v208 = vmax.f32 %v204, 0.0
  %v213 = vcombine.low %v205, %v206
  %v214 = vcombine.low %v207, %v208
  %v217 = vadd.f32 %v12, %v213
  %v218 = vadd.f32 %v13, %v214
  %219 = vst [vmem:[%s2] sm:$0xff] %v217
  %220 = vst [vmem:[%s2 + $0x8] sm:$0xff] %v218
  // Predicated region
  $region10: #{res_block.1} parent=0 // pred_check
    _
  $region11: #{res_block.1} parent=0 // pred_check_branch
    %222 = sbr.rel (0) target = $region13
  $region12: #{res_block.1} parent=0 // pred_region
    _
  $region13: #{res_block.1} parent=0 // pred_fallthru
    _
  // Predicated region
  $region14: #{res_block.1} parent=0 // pred_check
    _
  $region15: #{res_block.1} parent=0 // pred_check_branch
    %224 = sbr.rel (0) target = $region17
  $region16: #{res_block.1} parent=0 // pred_region
    _
  $region17: #{res_block.1} parent=0 // pred_fallthru
    _

</llo_original>
